<compile_context>
chip_gen: v6e
topology: v6e:2x2x1
jax: 0.10.0
libtpu: 0.0.40
codegen_flags: <defaults>
</compile_context>

<pallas_src>
import jax
import jax.numpy as jnp
from jax import lax
from jax.experimental import pallas as pl
from jax.experimental.pallas import tpu as pltpu


def _bits_to_unit_float(x_u32):
    """Top 23 random bits -> float32 in [1, 2), minus 1 -> [0, 1)."""
    mant = (x_u32 >> 9) | jnp.uint32(0x3F800000)
    return lax.bitcast_convert_type(mant, jnp.float32) - jnp.float32(1.0)


def _mock_encoder_kernel_hw(seed_ref, out_ref):
    """Fill out_ref (float32[tb, e]) with uniform [0,1) via the TPU HW PRNG.

    seed_ref: SMEM int32[1]
    out_ref:  VMEM float32[tb, e]   (tb % 8 == 0 or tb == batch; e == embed_dim)
    """
    tb, e = out_ref.shape
    # Distinct stream per grid tile (and therefore per TensorCore on v7x).
    pltpu.prng_seed(seed_ref[0], pl.program_id(0))
    # Draw bits at a vreg-aligned shape (multiple of (8, 128)); the HBM store
    # below stays at the true (tb, e) shape, so no extra HBM traffic.
    gb = max(8, pl.cdiv(tb, 8) * 8)
    ge = max(128, pl.cdiv(e, 128) * 128)
    bits = pltpu.prng_random_bits((gb, ge))
    x = lax.bitcast_convert_type(bits, jnp.uint32)
    vals = _bits_to_unit_float(x)
    out_ref[...] = vals[:tb, :e]


def _mock_encoder_kernel_hash(seed_ref, out_ref):
    """Fallback (non-TPU backends): stateless counter-hash uniforms.

    Strength-reduced: row term built as a (tb, 1) column (one small multiply),
    broadcast-added to the lane iota; single avalanche round.
    """
    tb, e = out_ref.shape
    row0 = pl.program_id(0) * tb
    rows = lax.broadcasted_iota(jnp.int32, (tb, 1), 0) + row0
    # int32 wrap-around is harmless here: only used as a hash input.
    row_term = rows * jnp.int32(e) + seed_ref[0] * jnp.int32(0x27D4EB2F)
    cols = lax.broadcasted_iota(jnp.int32, (tb, e), 1)
    ctr = cols + row_term  # (tb,1) broadcasts against (tb,e)

    x = lax.bitcast_convert_type(ctr, jnp.uint32)
    x = x ^ (x >> 16)
    x = x * jnp.uint32(0x7FEB352D)
    x = x ^ (x >> 15)
    out_ref[...] = _bits_to_unit_float(x)


def mock_encoder_forward(input_ids, attention_mask, embed_dim, seed=0):
    """JAX/Pallas equivalent of MockEncoder.forward.

    Returns float32[batch, embed_dim] of uniform [0, 1) random values.
    attention_mask is ignored (as in the reference module).
    """
    del attention_mask  # unused, same as the PyTorch module
    batch = int(input_ids.shape[0])
    e = int(embed_dim)

    # ---- tile-height selection -------------------------------------------
    # tb must be a multiple of 8 sublanes OR equal the full batch dim.
    min_rows = 8
    bytes_per_row = 4 * e  # float32 output
    # ~8 MiB per tile: double-buffered output (the only VMEM consumer) stays
    # well inside the 32 MiB scoped limit set below, and amortizes the
    # ~0.35 us per-grid-step overhead.
    tile_budget_rows = max(min_rows, ((8 * 1024 * 1024) // max(bytes_per_row, 1)) // 8 * 8)

    if batch <= min_rows:
        tb = batch  # single tiny block; full-dim block height is always legal
    else:
        # Aim for >= ~4 grid steps so v7x's two TensorCores both get work.
        target = pl.cdiv(pl.cdiv(batch, 4), 8) * 8
        tb = max(min_rows, min(tile_budget_rows, target))
    grid = (pl.cdiv(batch, tb),)

    # ---- kernel selection ---------------------------------------------------
    # HW PRNG has no lowering off-TPU; use the counter hash there (different
    # stream than the TPU path -- fine for a mock encoder).
    on_tpu = jax.default_backend() == "tpu"
    kernel = _mock_encoder_kernel_hw if on_tpu else _mock_encoder_kernel_hash

    seed_arr = jnp.asarray([seed], dtype=jnp.int32)

    # TODO(synk): if downstream consumers tolerate bf16, storing bf16 halves
    # the HBM-store traffic (near-2x on v5e/v6e); kept float32 to match torch.
    out = pl.pallas_call(
        kernel,
        out_shape=jax.ShapeDtypeStruct((batch, e), jnp.float32),
        grid=grid,
        in_specs=[pl.BlockSpec(memory_space=pltpu.SMEM)],  # seed, untiled
        out_specs=pl.BlockSpec((tb, e), lambda i: (i, 0)),
        compiler_params=pltpu.CompilerParams(
            dimension_semantics=("parallel",),
            vmem_limit_bytes=32 * 1024 * 1024,
        ),
    )(seed_arr)
    return out


if __name__ == "__main__":
    key = jax.random.PRNGKey(0)
    k_ids, _ = jax.random.split(key)

    # Small shapes consistent with the module's forward.
    batch, seq, embed_dim = 2, 8, 32
    input_ids = jax.random.randint(k_ids, (batch, seq), 0, 1000, dtype=jnp.int32)
    attention_mask = jnp.ones((batch, seq), dtype=jnp.int32)

    out = mock_encoder_forward(input_ids, attention_mask, embed_dim, seed=0)
    out = jax.block_until_ready(out)
    assert out.shape == (batch, embed_dim), out.shape
    assert out.dtype == jnp.float32, out.dtype
    assert bool(jnp.all(out >= 0.0)) and bool(jnp.all(out < 1.0))

    # Second run exercising a multi-tile grid, a ragged final row-block and a
    # non-128-multiple embed_dim (masked last lane chunk).
    batch2, embed_dim2 = 50, 200
    ids2 = jax.random.randint(k_ids, (batch2, seq), 0, 1000, dtype=jnp.int32)
    mask2 = jnp.ones((batch2, seq), dtype=jnp.int32)
    out2 = mock_encoder_forward(ids2, mask2, embed_dim2, seed=7)
    out2 = jax.block_until_ready(out2)
    assert out2.shape == (batch2, embed_dim2), out2.shape
    assert bool(jnp.all(out2 >= 0.0)) and bool(jnp.all(out2 < 1.0))
    assert float(jnp.std(out2)) > 0.0  # actually random, not a constant fill

    print("KERNEL_OK")
</pallas_src>

<mosaic_0001>
module attributes {stable_mosaic.version = 11 : i64} {
  func.func @_mock_encoder_kernel_hash(%arg0: i32, %arg1: memref<1xi32, #tpu.memory_space<smem>>, %arg2: memref<2x32xf32, #tpu.memory_space<vmem>>) attributes {dimension_semantics = [#tpu.dimension_semantics<parallel>], iteration_bounds = array<i64: 1>, scalar_prefetch = 0 : i64, scratch_operands = 0 : i64, tpu.core_type = #tpu.core_type<tc>, window_params = [{transform_indices = @transform_0, window_bounds = array<i64: 1>}, {transform_indices = @transform_1, window_bounds = array<i64: 2, 32>}]} {
    %c2_i32 = arith.constant 2 : i32
    %0 = arith.muli %arg0, %c2_i32 : i32
    %1 = tpu.iota {dimensions = array<i32: 0>} : vector<2x1xi32>
    %2 = vector.broadcast %0 : i32 to vector<2x1xi32>
    %3 = arith.addi %1, %2 : vector<2x1xi32>
    %c32_i32 = arith.constant 32 : i32
    %4 = vector.broadcast %c32_i32 : i32 to vector<2x1xi32>
    %5 = arith.muli %3, %4 : vector<2x1xi32>
    %c0 = arith.constant 0 : index
    %6 = memref.load %arg1[%c0] : memref<1xi32, #tpu.memory_space<smem>>
    %c668265263_i32 = arith.constant 668265263 : i32
    %7 = arith.muli %6, %c668265263_i32 : i32
    %8 = vector.broadcast %7 : i32 to vector<2x1xi32>
    %9 = arith.addi %5, %8 : vector<2x1xi32>
    %10 = tpu.iota {dimensions = array<i32: 1>} : vector<2x32xi32>
    %11 = vector.broadcast %9 : vector<2x1xi32> to vector<2x32xi32>
    %12 = arith.addi %10, %11 : vector<2x32xi32>
    %13 = tpu.bitcast %12 : vector<2x32xi32> -> vector<2x32xi32>
    %c16_i32 = arith.constant 16 : i32
    %14 = vector.broadcast %c16_i32 : i32 to vector<2x32xi32>
    %15 = arith.shrui %13, %14 : vector<2x32xi32>
    %16 = arith.xori %13, %15 : vector<2x32xi32>
    %c2146121005_i32 = arith.constant 2146121005 : i32
    %17 = vector.broadcast %c2146121005_i32 : i32 to vector<2x32xi32>
    %18 = arith.muli %16, %17 : vector<2x32xi32>
    %c15_i32 = arith.constant 15 : i32
    %19 = vector.broadcast %c15_i32 : i32 to vector<2x32xi32>
    %20 = arith.shrui %18, %19 : vector<2x32xi32>
    %21 = arith.xori %18, %20 : vector<2x32xi32>
    %c9_i32 = arith.constant 9 : i32
    %22 = vector.broadcast %c9_i32 : i32 to vector<2x32xi32>
    %23 = arith.shrui %21, %22 : vector<2x32xi32>
    %c1065353216_i32 = arith.constant 1065353216 : i32
    %24 = vector.broadcast %c1065353216_i32 : i32 to vector<2x32xi32>
    %25 = arith.ori %23, %24 : vector<2x32xi32>
    %26 = tpu.bitcast %25 : vector<2x32xi32> -> vector<2x32xf32>
    %cst = arith.constant 1.000000e+00 : f32
    %27 = vector.broadcast %cst : f32 to vector<2x32xf32>
    %28 = arith.subf %26, %27 : vector<2x32xf32>
    %c0_0 = arith.constant 0 : index
    %c0_1 = arith.constant 0 : index
    %29 = vector.load %arg2[%c0_0, %c0_1] : memref<2x32xf32, #tpu.memory_space<vmem>>, vector<2x32xf32>
    tpu.vector_store %arg2[%c0_0, %c0_1], %28 {strides = array<i32>} : memref<2x32xf32, #tpu.memory_space<vmem>>, vector<2x32xf32>,
    return
  }
  func.func @transform_0(%arg0: i32) -> i32 {
    %c0_i32 = arith.constant 0 : i32
    %c0_i32_0 = arith.constant 0 : i32
    return %c0_i32 : i32
  }
  func.func @transform_1(%arg0: i32) -> (i32, i32) {
    %c0_i32 = arith.constant 0 : i32
    %c0_i32_0 = arith.constant 0 : i32
    return %arg0, %c0_i32 : i32, i32
  }
}

</mosaic_0001>

<llo_original>
// kernel: tpu_custom_call.1
$region0: #{tpu_custom_call.1}
  #allocation0 [shape = 'u32[]', space=smem, size = 0x4, offset = 0x4, fixed_abs, tag = 'smem constant byte address 0x4 - core index']
  #allocation1 [shape = 'u32[144,128]{1,0:T(1,128)}', space=vmem, size = 0x12000, scoped, tag = 'internal scratch']
  #allocation2 [shape = 's32[1]{0:T(128)S(6)}', space=smem, size = 0x200, scoped, tag = 'scoped memory for tpu_custom_call.1']
  %s0 = inlined_call_operand.<no memory space> [shape: s32[1], index: 0, kind: input, shape index: {}]
  %s1 = inlined_call_operand.hbm [shape: f32[2,32], index: 1, kind: output, shape index: {}]
  %s2 = sld [smem:[#allocation0]]
  $region14: #{tpu_custom_call.1} parent=0
    _
  %s4 = ssub.s32 1, %s2
  %s5 = scalar_select 0, %s4, %s2
  %6 = sst [smem:[#allocation2]] %s0
  $region1: #{tpu_custom_call.1} parent=0
    #allocation3 [shape = 'u8[1024]{0}', space=vmem, size = 0x400, scoped, tag = 'output window, operand 0, single buffered']
    #allocation4 [shape = 's32[1]{0}', space=sflag, size = 0x4, scoped, tag = 'scoped memory for tpu_custom_call.1']
    %7 = vsyncpa [#allocation4], 0
    // Predicated region
    $region2: #{tpu_custom_call.1} parent=1 // pred_check
      _
    $region3: #{tpu_custom_call.1} parent=1 // pred_check_branch
      %9 = sbr.rel (0) target = $region5
    $region4: #{tpu_custom_call.1} parent=1 // pred_region
      _
    $region5: #{tpu_custom_call.1} parent=1 // pred_fallthru
      _
    %s10 = smul.u32 0, 2
    %v11 = vlaneseq
    %v12 = vshrl.u32 %v11, 7
    %v13 = vstv %s10
    %v14 = vadd.s32 %v12, %v13
    %v15 = vmul.u32 %v14, 32
    %s16 = sld [smem:[#allocation2]]
    %s17 = smul.u32 %s16, 668265263
    %v18 = vstv %s17
    %v19 = vadd.s32 %v15, %v18
    %v20 = vlaneseq
    %v21 = vand.u32 %v20, 127
    %v22 = vadd.s32 %v21, %v19
    %v23 = vshrl.u32 %v22, 16
    %v24 = vxor.u32 %v22, %v23
    %v25 = vmul.u32 %v24, 2146121005
    %v26 = vshrl.u32 %v25, 15
    %v27 = vxor.u32 %v25, %v26
    %v28 = vshrl.u32 %v27, 9
    %v29 = vor.u32 %v28, 1065353216
    %v31 = vsub.f32 %v29, 1.0
    %vm32 = vcmask 254976
    %33 = vst.msk [vmem:[#allocation3] sm:$0x3] %vm32, %v31
    // Predicated region
    $region6: #{tpu_custom_call.1} parent=1 // pred_check
      _
    $region7: #{tpu_custom_call.1} parent=1 // pred_check_branch
      %35 = sbr.rel (0) target = $region9
    $region8: #{tpu_custom_call.1} parent=1 // pred_region
      %s37 = ssub.s32 32, 32
      %38 = vsyncadd [#allocation4], %s37
      %s40 = sshll.u32 [#allocation3], 4
      %s41 = int_to_ptr.vmem [resolvable:$true] %s40
      %43 = dma.vmem_to_hbm [thread:$0]  %s41, 32, %s1, [#allocation4]
    $region9: #{tpu_custom_call.1} parent=1 // pred_fallthru
      _
    // Predicated region
    $region10: #{tpu_custom_call.1} parent=1 // pred_check
      _
    $region11: #{tpu_custom_call.1} parent=1 // pred_check_branch
      %45 = sbr.rel (0) target = $region13
    $region12: #{tpu_custom_call.1} parent=1 // pred_region
      %46 = dma.done [#allocation4], 32
    $region13: #{tpu_custom_call.1} parent=1 // pred_fallthru
      _
    %47 = vsyncpa [#allocation4], 1

</llo_original>
